<compile_context>
chip_gen: v7x
topology: tpu7x:2x2x1
jax: 0.10.0
libtpu: 0.0.40
codegen_flags: <defaults>
</compile_context>

<pallas_src>
import jax
import jax.numpy as jnp
from jax.experimental import pallas as pl
from jax.experimental.pallas import tpu as pltpu


def _round_up(x, m):
    return ((x + m - 1) // m) * m


def _sublane_align(dtype):
    # Sublane alignment for the second-to-last block dim: 8 (f32), 16 (bf16), 32 (int8/fp8).
    return max(8, 32 // max(1, jnp.dtype(dtype).itemsize))


def _divisors_desc(n):
    return [d for d in range(n, 0, -1) if n % d == 0]


def _choose_tiles(B, T, H, dtype, enc_tile_bytes):
    """Pick (tb, tt) so the *padded* enc tile fits `enc_tile_bytes`.

    Legality: a block dim must be a multiple of the dtype sublane alignment (second-to-
    last dim) or equal the full array dim.  Preference order (per perf review):
      1. grow tt (long contiguous DMA rows) before tb,
      2. keep >= 2 B-tiles when an aligned split exists (v7x megacore),
      3. never fall back to tb == B unless the full-batch block still fits the byte
         budget — shrink tt instead.
    """
    itemsize = jnp.dtype(dtype).itemsize
    sub = _sublane_align(dtype)
    h_pad = _round_up(H, 128)                       # lane padding in VMEM

    def row_bytes(tt):                              # one batch row of a padded enc tile
        return _round_up(tt, sub) * h_pad * itemsize

    def pick_tb(max_tb):
        if max_tb < 1:
            return None
        for d in _divisors_desc(B):
            if d <= max_tb and (d % sub == 0 or d == B):
                return d
        return None

    for tt in _divisors_desc(T):
        if tt != T and tt % sub != 0:
            continue                                # illegal second-to-last block dim
        max_tb = enc_tile_bytes // row_bytes(tt)
        tb = None
        if B >= 2 * sub:                            # try to keep >= 2 B tiles (megacore)
            tb = pick_tb(min(max_tb, B // 2))
        if tb is None:
            tb = pick_tb(max_tb)
        if tb is not None:
            return tb, tt

    # Pathological shapes: smallest legal tiles, ignore the byte budget.
    return (sub if B % sub == 0 else B), (sub if T % sub == 0 else T)


def attention_kernel(enc_ref, dec_ref, out_ref, m_sc, l_sc, acc_sc):
    # enc_ref: (tb, tt, H)   dec_ref: (tb, H)   out_ref: (tb, H)
    # scratch (persists across the T grid axis): m_sc/l_sc (tb, 1), acc_sc (tb, H), f32.
    t_idx = pl.program_id(1)

    @pl.when(t_idx == 0)
    def _init():
        m_sc[...] = jnp.full(m_sc.shape, -jnp.inf, m_sc.dtype)
        l_sc[...] = jnp.zeros(l_sc.shape, l_sc.dtype)
        acc_sc[...] = jnp.zeros(acc_sc.shape, acc_sc.dtype)

    enc = enc_ref[...]                                           # (tb, tt, H)
    dec = dec_ref[...]                                           # (tb, H)

    # scores[b, t] = <dec[b], enc[b, t, :]> : batched MXU matmul (q = 1), f32 accumulate.
    scores = jnp.einsum("bqh,bth->bqt", dec[:, None, :], enc,
                        preferred_element_type=jnp.float32)[:, 0, :]   # (tb, tt)

    # Flash-style online softmax over the encoder-time grid axis.
    m_prev = m_sc[...]                                           # (tb, 1)
    m_new = jnp.maximum(m_prev, jnp.max(scores, axis=-1, keepdims=True))
    alpha = jnp.exp(m_prev - m_new)                              # (tb, 1)
    p = jnp.exp(scores - m_new)                                  # (tb, tt)
    l_sc[...] = alpha * l_sc[...] + jnp.sum(p, axis=-1, keepdims=True)

    # Partial context sum_t p[b, t] * enc[b, t, :] : batched MXU matmul (m = 1).
    ctx = jnp.einsum("bqt,bth->bqh", p[:, None, :].astype(enc.dtype), enc,
                     preferred_element_type=jnp.float32)[:, 0, :]      # (tb, H)
    acc_sc[...] = alpha * acc_sc[...] + ctx
    m_sc[...] = m_new

    @pl.when(t_idx == pl.num_programs(1) - 1)
    def _finalize():
        # Exact normalization (runs once per B tile); the approx reciprocal previously
        # used here was the source of the >1e-3 mismatch vs the reference.
        out_ref[...] = (acc_sc[...] / l_sc[...]).astype(out_ref.dtype)


def attention(enc_hid_states, dec_hid, *, enc_tile_bytes=12 * 1024 * 1024):
    """enc_hid_states: (B, T, H), dec_hid: (B, H) -> c_t: (B, H)."""
    B, T, H = enc_hid_states.shape
    assert dec_hid.shape == (B, H), (dec_hid.shape, (B, H))

    out_dtype = jnp.result_type(enc_hid_states.dtype, dec_hid.dtype)

    # Clamp the per-tile budget so the double-buffered enc tile (+ dec/out/scratch and
    # Mosaic internal scratch) stays well inside v7x's 64 MiB physical VMEM.
    enc_tile_bytes = int(min(max(enc_tile_bytes, 64 * 1024), 14 * 1024 * 1024))
    tb, tt = _choose_tiles(B, T, H, enc_hid_states.dtype, enc_tile_bytes)
    grid = (B // tb, T // tt)                       # reduction (T) axis last

    return pl.pallas_call(
        attention_kernel,
        out_shape=jax.ShapeDtypeStruct((B, H), out_dtype),
        grid_spec=pltpu.PrefetchScalarGridSpec(
            num_scalar_prefetch=0,
            grid=grid,
            in_specs=[
                pl.BlockSpec((tb, tt, H), lambda b, t: (b, t, 0)),  # enc: streamed over T
                pl.BlockSpec((tb, H), lambda b, t: (b, 0)),         # dec: resident over T
            ],
            out_specs=pl.BlockSpec((tb, H), lambda b, t: (b, 0)),    # out: resident over T
            scratch_shapes=[
                pltpu.VMEM((tb, 1), jnp.float32),   # running max m
                pltpu.VMEM((tb, 1), jnp.float32),   # running denominator l
                pltpu.VMEM((tb, H), jnp.float32),   # context accumulator
            ],
        ),
        compiler_params=pltpu.CompilerParams(
            # B tiles shard across v7x's two TensorCores; T is the sequential reduction.
            dimension_semantics=("parallel", "arbitrary"),
            # 2 x <=14 MiB enc buffers + dec/out/scratch + compiler headroom; 48 MiB keeps
            # margin on v7x (64 MiB physical) and is trivially fine on v5e/v6e (128 MiB).
            vmem_limit_bytes=48 * 1024 * 1024,
        ),
    )(enc_hid_states, dec_hid)


def attention_ref(enc_hid_states, dec_hid):
    """Pure-JAX reference matching the PyTorch forward exactly (full f32 precision)."""
    scores = jnp.einsum("bth,bh->bt", enc_hid_states, dec_hid,
                        precision=jax.lax.Precision.HIGHEST)
    align = jax.nn.softmax(scores, axis=1)
    return jnp.einsum("bt,bth->bh", align, enc_hid_states,
                      precision=jax.lax.Precision.HIGHEST)


def _check(B, T, H, **kwargs):
    key = jax.random.PRNGKey(0)
    k_enc, k_dec = jax.random.split(key)
    enc = jax.random.normal(k_enc, (B, T, H), dtype=jnp.float32)
    dec = jax.random.normal(k_dec, (B, H), dtype=jnp.float32)

    c_t = jax.block_until_ready(attention(enc, dec, **kwargs))
    c_ref = attention_ref(enc, dec)

    assert c_t.shape == (B, H) and c_t.dtype == c_ref.dtype
    assert jnp.allclose(c_t, c_ref, atol=2e-4, rtol=2e-4), (
        B, T, H, float(jnp.max(jnp.abs(c_t - c_ref))))


if __name__ == "__main__":
    # Module-scale demo shapes: batch=2, encoder length=8, hidden=32 (single tile).
    _check(2, 8, 32)
    # Multi-tile path: 2 B-tiles ("parallel") x 4 T-tiles (online softmax across the
    # "arbitrary" reduction axis), forced by a tiny per-tile byte budget.
    _check(16, 64, 128, enc_tile_bytes=64 * 1024)
    print("KERNEL_OK")
</pallas_src>

<mosaic_0001>
module attributes {stable_mosaic.version = 11 : i64} {
  func.func @attention_kernel(%arg0: i32, %arg1: i32, %arg2: memref<2x8x32xf32, #tpu.memory_space<vmem>>, %arg3: memref<2x32xf32, #tpu.memory_space<vmem>>, %arg4: memref<2x32xf32, #tpu.memory_space<vmem>>, %arg5: memref<2x1xf32, #tpu.memory_space<vmem>>, %arg6: memref<2x1xf32, #tpu.memory_space<vmem>>, %arg7: memref<2x32xf32, #tpu.memory_space<vmem>>) attributes {dimension_semantics = [#tpu.dimension_semantics<parallel>, #tpu.dimension_semantics<arbitrary>], iteration_bounds = array<i64: 1, 1>, scalar_prefetch = 0 : i64, scratch_operands = 3 : i64, tpu.core_type = #tpu.core_type<tc>, window_params = [{transform_indices = @transform_0, window_bounds = array<i64: 2, 8, 32>}, {transform_indices = @transform_1, window_bounds = array<i64: 2, 32>}, {transform_indices = @transform_2, window_bounds = array<i64: 2, 32>}]} {
    %c0_i32 = arith.constant 0 : i32
    %0 = arith.cmpi eq, %arg1, %c0_i32 : i32
    %1 = arith.extui %0 : i1 to i32
    %c0_i32_0 = arith.constant 0 : i32
    %2 = arith.cmpi ne, %1, %c0_i32_0 : i32
    scf.if %2 {
      %cst_22 = arith.constant 0xFF800000 : f32
      %35 = vector.broadcast %cst_22 : f32 to vector<2x1xf32>
      %c0_23 = arith.constant 0 : index
      %c0_24 = arith.constant 0 : index
      %36 = vector.load %arg5[%c0_23, %c0_24] : memref<2x1xf32, #tpu.memory_space<vmem>>, vector<2x1xf32>
      tpu.vector_store %arg5[%c0_23, %c0_24], %35 {strides = array<i32>} : memref<2x1xf32, #tpu.memory_space<vmem>>, vector<2x1xf32>,
      %cst_25 = arith.constant 0.000000e+00 : f32
      %37 = vector.broadcast %cst_25 : f32 to vector<2x1xf32>
      %c0_26 = arith.constant 0 : index
      %c0_27 = arith.constant 0 : index
      %38 = vector.load %arg6[%c0_26, %c0_27] : memref<2x1xf32, #tpu.memory_space<vmem>>, vector<2x1xf32>
      tpu.vector_store %arg6[%c0_26, %c0_27], %37 {strides = array<i32>} : memref<2x1xf32, #tpu.memory_space<vmem>>, vector<2x1xf32>,
      %cst_28 = arith.constant 0.000000e+00 : f32
      %39 = vector.broadcast %cst_28 : f32 to vector<2x32xf32>
      %c0_29 = arith.constant 0 : index
      %c0_30 = arith.constant 0 : index
      %40 = vector.load %arg7[%c0_29, %c0_30] : memref<2x32xf32, #tpu.memory_space<vmem>>, vector<2x32xf32>
      tpu.vector_store %arg7[%c0_29, %c0_30], %39 {strides = array<i32>} : memref<2x32xf32, #tpu.memory_space<vmem>>, vector<2x32xf32>,
    } else {
    }
    %c0 = arith.constant 0 : index
    %c0_1 = arith.constant 0 : index
    %c0_2 = arith.constant 0 : index
    %3 = vector.load %arg2[%c0, %c0_1, %c0_2] : memref<2x8x32xf32, #tpu.memory_space<vmem>>, vector<2x8x32xf32>
    %c0_3 = arith.constant 0 : index
    %c0_4 = arith.constant 0 : index
    %4 = vector.load %arg3[%c0_3, %c0_4] : memref<2x32xf32, #tpu.memory_space<vmem>>, vector<2x32xf32>
    %5 = vector.shape_cast %4 : vector<2x32xf32> to vector<2x1x32xf32>
    "tpu.trace_start"() <{level = 10 : i32, message = "bqh,bth->bqt"}> : () -> ()
    %cst = arith.constant dense<0.000000e+00> : vector<2x1x8xf32>
    %6 = tpu.matmul %5, %3, %cst {dimension_numbers = #tpu.dot_dimension_numbers<[2], [2], [1], [1], [0, 0, 0, 1, 1, 1], [0], [0]>} : vector<2x1x32xf32>, vector<2x8x32xf32>, vector<2x1x8xf32> -> vector<2x1x8xf32>
    "tpu.trace_stop"() : () -> ()
    %7 = vector.shape_cast %6 : vector<2x1x8xf32> to vector<2x8xf32>
    %c0_5 = arith.constant 0 : index
    %c0_6 = arith.constant 0 : index
    %8 = vector.load %arg5[%c0_5, %c0_6] : memref<2x1xf32, #tpu.memory_space<vmem>>, vector<2x1xf32>
    %cst_7 = arith.constant dense<0xFF800000> : vector<2xf32>
    %9 = vector.multi_reduction <maximumf>, %7, %cst_7 [1] : vector<2x8xf32> to vector<2xf32>
    %10 = vector.shape_cast %9 : vector<2xf32> to vector<2x1xf32>
    %11 = arith.maximumf %8, %10 : vector<2x1xf32>
    %12 = arith.subf %8, %11 : vector<2x1xf32>
    %13 = math.exp %12 : vector<2x1xf32>
    %14 = vector.broadcast %11 : vector<2x1xf32> to vector<2x8xf32>
    %15 = arith.subf %7, %14 : vector<2x8xf32>
    %16 = math.exp %15 : vector<2x8xf32>
    %c0_8 = arith.constant 0 : index
    %c0_9 = arith.constant 0 : index
    %17 = vector.load %arg6[%c0_8, %c0_9] : memref<2x1xf32, #tpu.memory_space<vmem>>, vector<2x1xf32>
    %18 = arith.mulf %13, %17 : vector<2x1xf32>
    %cst_10 = arith.constant dense<0.000000e+00> : vector<2xf32>
    %19 = vector.multi_reduction <add>, %16, %cst_10 [1] : vector<2x8xf32> to vector<2xf32>
    %20 = vector.shape_cast %19 : vector<2xf32> to vector<2x1xf32>
    %21 = arith.addf %18, %20 : vector<2x1xf32>
    %c0_11 = arith.constant 0 : index
    %c0_12 = arith.constant 0 : index
    %22 = vector.load %arg6[%c0_11, %c0_12] : memref<2x1xf32, #tpu.memory_space<vmem>>, vector<2x1xf32>
    tpu.vector_store %arg6[%c0_11, %c0_12], %21 {strides = array<i32>} : memref<2x1xf32, #tpu.memory_space<vmem>>, vector<2x1xf32>,
    %23 = vector.shape_cast %16 : vector<2x8xf32> to vector<2x1x8xf32>
    "tpu.trace_start"() <{level = 10 : i32, message = "bqt,bth->bqh"}> : () -> ()
    %cst_13 = arith.constant dense<0.000000e+00> : vector<2x1x32xf32>
    %24 = tpu.matmul %23, %3, %cst_13 {dimension_numbers = #tpu.dot_dimension_numbers<[2], [1], [1], [2], [0, 0, 0, 1, 1, 2], [0], [0]>} : vector<2x1x8xf32>, vector<2x8x32xf32>, vector<2x1x32xf32> -> vector<2x1x32xf32>
    "tpu.trace_stop"() : () -> ()
    %25 = vector.shape_cast %24 : vector<2x1x32xf32> to vector<2x32xf32>
    %c0_14 = arith.constant 0 : index
    %c0_15 = arith.constant 0 : index
    %26 = vector.load %arg7[%c0_14, %c0_15] : memref<2x32xf32, #tpu.memory_space<vmem>>, vector<2x32xf32>
    %27 = vector.broadcast %13 : vector<2x1xf32> to vector<2x32xf32>
    %28 = arith.mulf %27, %26 : vector<2x32xf32>
    %29 = arith.addf %28, %25 : vector<2x32xf32>
    %c0_16 = arith.constant 0 : index
    %c0_17 = arith.constant 0 : index
    %30 = vector.load %arg7[%c0_16, %c0_17] : memref<2x32xf32, #tpu.memory_space<vmem>>, vector<2x32xf32>
    tpu.vector_store %arg7[%c0_16, %c0_17], %29 {strides = array<i32>} : memref<2x32xf32, #tpu.memory_space<vmem>>, vector<2x32xf32>,
    %c0_18 = arith.constant 0 : index
    %c0_19 = arith.constant 0 : index
    %31 = vector.load %arg5[%c0_18, %c0_19] : memref<2x1xf32, #tpu.memory_space<vmem>>, vector<2x1xf32>
    tpu.vector_store %arg5[%c0_18, %c0_19], %11 {strides = array<i32>} : memref<2x1xf32, #tpu.memory_space<vmem>>, vector<2x1xf32>,
    %c0_i32_20 = arith.constant 0 : i32
    %32 = arith.cmpi eq, %arg1, %c0_i32_20 : i32
    %33 = arith.extui %32 : i1 to i32
    %c0_i32_21 = arith.constant 0 : i32
    %34 = arith.cmpi ne, %33, %c0_i32_21 : i32
    scf.if %34 {
      %c0_22 = arith.constant 0 : index
      %c0_23 = arith.constant 0 : index
      %35 = vector.load %arg7[%c0_22, %c0_23] : memref<2x32xf32, #tpu.memory_space<vmem>>, vector<2x32xf32>
      %c0_24 = arith.constant 0 : index
      %c0_25 = arith.constant 0 : index
      %36 = vector.load %arg6[%c0_24, %c0_25] : memref<2x1xf32, #tpu.memory_space<vmem>>, vector<2x1xf32>
      %37 = vector.broadcast %36 : vector<2x1xf32> to vector<2x32xf32>
      %38 = arith.divf %35, %37 : vector<2x32xf32>
      %c0_26 = arith.constant 0 : index
      %c0_27 = arith.constant 0 : index
      %39 = vector.load %arg4[%c0_26, %c0_27] : memref<2x32xf32, #tpu.memory_space<vmem>>, vector<2x32xf32>
      tpu.vector_store %arg4[%c0_26, %c0_27], %38 {strides = array<i32>} : memref<2x32xf32, #tpu.memory_space<vmem>>, vector<2x32xf32>,
    } else {
    }
    return
  }
  func.func @transform_0(%arg0: i32, %arg1: i32) -> (i32, i32, i32) {
    %c0_i32 = arith.constant 0 : i32
    %c0_i32_0 = arith.constant 0 : i32
    return %arg0, %arg1, %c0_i32 : i32, i32, i32
  }
  func.func @transform_1(%arg0: i32, %arg1: i32) -> (i32, i32) {
    %c0_i32 = arith.constant 0 : i32
    %c0_i32_0 = arith.constant 0 : i32
    return %arg0, %c0_i32 : i32, i32
  }
  func.func @transform_2(%arg0: i32, %arg1: i32) -> (i32, i32) {
    %c0_i32 = arith.constant 0 : i32
    %c0_i32_0 = arith.constant 0 : i32
    return %arg0, %c0_i32 : i32, i32
  }
}

</mosaic_0001>

<llo_original>
// kernel: tpu_custom_call.1
$region0: #{tpu_custom_call.1}
  #allocation0 [shape = 'u32[]', space=smem, size = 0x4, offset = 0x4, fixed_abs, tag = 'smem constant byte address 0x4 - core index']
  #allocation1 [shape = 'u32[144,128]{1,0:T(1,128)}', space=vmem, size = 0x12000, scoped, tag = 'internal scratch']
  #allocation2 [shape = 'f32[2,1]{1,0:T(2,128)}', space=vmem, size = 0x400, scoped, tag = 'scratch operand']
  #allocation3 [shape = 'f32[2,1]{1,0:T(2,128)}', space=vmem, size = 0x400, scoped, tag = 'scratch operand']
  #allocation4 [shape = 'f32[2,32]{1,0:T(2,128)}', space=vmem, size = 0x400, scoped, tag = 'scratch operand']
  %s0 = inlined_call_operand.hbm [shape: f32[2,8,32], index: 0, kind: input, shape index: {}]
  %s1 = inlined_call_operand.vmem [shape: f32[2,32], index: 1, kind: input, shape index: {}]
  %s2 = inlined_call_operand.hbm [shape: f32[2,32], index: 2, kind: output, shape index: {}]
  %s3 = sld [smem:[#allocation0]]
  $region30: #{tpu_custom_call.1} parent=0
    _
  %s5 = ssub.s32 1, %s3
  %s6 = scalar_select 0, %s5, %s3
  $region1: #{tpu_custom_call.1} parent=0
    #allocation5 [shape = 'u8[8192]{0}', space=vmem, size = 0x2000, scoped, tag = 'input window, operand 0, single buffered']
    #allocation6 [shape = 's32[1]{0}', space=sflag, size = 0x4, scoped, tag = 'scoped memory for tpu_custom_call.1']
    #allocation7 [shape = 's32[1]{0}', space=sflag, size = 0x4, scoped, tag = 'scoped memory for tpu_custom_call.1']
    #allocation8 [shape = 'u8[1024]{0}', space=vmem, size = 0x400, scoped, tag = 'output window, operand 0, single buffered']
    %7 = vsyncpa [#allocation6], 0
    %8 = vsyncpa [#allocation7], 0
    // Predicated region
    $region2: #{tpu_custom_call.1} parent=1 // pred_check
      _
    $region3: #{tpu_custom_call.1} parent=1 // pred_check_branch
      %10 = sbr.rel (0) target = $region5
    $region4: #{tpu_custom_call.1} parent=1 // pred_region
      %s12 = ssub.s32 256, 256
      %13 = vsyncadd [#allocation6], %s12
      %s14 = sshll.u32 [#allocation5], 4
      %s15 = int_to_ptr.vmem [resolvable:$true] %s14
      %20 = dma.hbm_to_vmem [thread:$0]  %s0, 256, %s15, [#allocation6], 128, 128, 8
    $region5: #{tpu_custom_call.1} parent=1 // pred_fallthru
      _
    // Predicated region
    $region6: #{tpu_custom_call.1} parent=1 // pred_check
      _
    $region7: #{tpu_custom_call.1} parent=1 // pred_check_branch
      %22 = sbr.rel (0) target = $region9
    $region8: #{tpu_custom_call.1} parent=1 // pred_region
      _
    $region9: #{tpu_custom_call.1} parent=1 // pred_fallthru
      _
    // Predicated region
    $region10: #{tpu_custom_call.1} parent=1 // pred_check
      _
    $region11: #{tpu_custom_call.1} parent=1 // pred_check_branch
      %24 = sbr.rel (0) target = $region13
    $region12: #{tpu_custom_call.1} parent=1 // pred_region
      %25 = dma.done [#allocation6], 256
    $region13: #{tpu_custom_call.1} parent=1 // pred_fallthru
      _
    %p26 = scmp.eq.s32.totalorder 0, 0
    // Predicated region
    $region14: #{tpu_custom_call.1} parent=1 // pred_check
      %p27 = pneg %p26
    $region15: #{tpu_custom_call.1} parent=1 // pred_check_branch
      %29 = sbr.rel (%p27) target = $region17
    $region16: #{tpu_custom_call.1} parent=1 // pred_region
      %vm30 = vcmask 1024
      %31 = vst.msk [vmem:[#allocation2] sm:$0x3] %vm30, -inf
      %32 = vst.msk [vmem:[#allocation3] sm:$0x3] %vm30, 0.0
      %vm33 = vcmask 254976
      %34 = vst.msk [vmem:[#allocation4] sm:$0x3] %vm33, 0.0
    $region17: #{tpu_custom_call.1} parent=1 // pred_fallthru
      _
    %v35 = vld [vmem:[#allocation5] sm:$0xff]
    %v36 = vld [vmem:[#allocation5 + $0x8] sm:$0xff]
    %v37 = vld [vmem:[%s1] sm:$0x3]
    %v40 = vunpack.c.l.s4 1966171168
    %v41 = vunpack.c.0.s8 %v40
    %v42 = vlaneseq
    %v43 = vshrl.u32 %v42, 7
    %v44 = vsub.s32 %v41, %v43
    %v45 = vrot.slane %v37, %v44
    %v46 = vcombine.high %v45, %v45
    %v48 = vunpack.c.l.s4 1966171168
    %v49 = vunpack.c.0.s8 %v48
    %v50 = vlaneseq
    %v51 = vshrl.u32 %v50, 7
    %v52 = vsub.s32 %v49, %v51
    %v53 = vrot.slane %v45, %v52
    %v55 = vunpack.c.l.s4 1966171168
    %v56 = vunpack.c.0.s8 %v55
    %v57 = vlaneseq
    %v58 = vshrl.u32 %v57, 7
    %v59 = vsub.s32 %v56, %v58
    %v60 = vrot.slane %v46, %v59
    %vm61 = vcmask 261120
    %v62 = vsel %vm61, %v53, 0
    %v65 = vsel %vm61, %v35, 0
    %67 = vmatprep.subr.mxu0 0.0
    %68 = vmatpush1.xpose.msra.mxu0 %v65
    %69 = vmatprep.subr.mxu0 0.0
    %70 = vmatpush1.xpose.msra.mxu0 0.0
    %71 = vmatprep.subr.mxu0 0.0
    %72 = vmatpush1.xpose.msra.mxu0 0.0
    %73 = vmatprep.subr.mxu0 0.0
    %74 = vmatpush1.xpose.msra.mxu0 0.0
    %75 = vmatprep.subr.mxu0 0.0
    %76 = vmatpush1.xpose.msra.mxu0 0.0
    %77 = vmatprep.subr.mxu0 0.0
    %78 = vmatpush1.xpose.msra.mxu0 0.0
    %79 = vmatprep.subr.mxu0 0.0
    %80 = vmatpush1.xpose.msra.mxu0 0.0
    %81 = vmatprep.subr.mxu0 0.0
    %82 = vmatpush1.xpose.msra.mxu0 0.0
    %83 = vmatprep.subr.mxu0 0.0
    %84 = vmatpush1.xpose.msra.mxu0 0.0
    %85 = vmatprep.subr.mxu0 0.0
    %86 = vmatpush1.xpose.msra.mxu0 0.0
    %87 = vmatprep.subr.mxu0 0.0
    %88 = vmatpush1.xpose.msra.mxu0 0.0
    %89 = vmatprep.subr.mxu0 0.0
    %90 = vmatpush1.xpose.msra.mxu0 0.0
    %91 = vmatprep.subr.mxu0 0.0
    %92 = vmatpush1.xpose.msra.mxu0 0.0
    %93 = vmatprep.subr.mxu0 0.0
    %94 = vmatpush1.xpose.msra.mxu0 0.0
    %95 = vmatprep.subr.mxu0 0.0
    %96 = vmatpush1.xpose.msra.mxu0 0.0
    %97 = vmatprep.subr.mxu0 0.0
    %98 = vmatpush1.xpose.msra.mxu0 0.0
    %99 = vmatprep.subr.mxu0 0.0
    %100 = vmatpush1.xpose.msra.mxu0 0.0
    %101 = vmatprep.subr.mxu0 0.0
    %102 = vmatpush1.xpose.msra.mxu0 0.0
    %103 = vmatprep.subr.mxu0 0.0
    %104 = vmatpush1.xpose.msra.mxu0 0.0
    %105 = vmatprep.subr.mxu0 0.0
    %106 = vmatpush1.xpose.msra.mxu0 0.0
    %107 = vmatprep.subr.mxu0 0.0
    %108 = vmatpush1.xpose.msra.mxu0 0.0
    %109 = vmatprep.subr.mxu0 0.0
    %110 = vmatpush1.xpose.msra.mxu0 0.0
    %111 = vmatprep.subr.mxu0 0.0
    %112 = vmatpush1.xpose.msra.mxu0 0.0
    %113 = vmatprep.subr.mxu0 0.0
    %114 = vmatpush1.xpose.msra.mxu0 0.0
    %115 = vmatprep.subr.mxu0 0.0
    %116 = vmatpush1.xpose.msra.mxu0 0.0
    %117 = vmatprep.subr.mxu0 0.0
    %118 = vmatpush1.xpose.msra.mxu0 0.0
    %119 = vmatprep.subr.mxu0 0.0
    %120 = vmatpush1.xpose.msra.mxu0 0.0
    %121 = vmatprep.subr.mxu0 0.0
    %122 = vmatpush1.xpose.msra.mxu0 0.0
    %123 = vmatprep.subr.mxu0 0.0
    %124 = vmatpush1.xpose.msra.mxu0 0.0
    %125 = vmatprep.subr.mxu0 0.0
    %126 = vmatpush1.xpose.msra.mxu0 0.0
    %127 = vmatprep.subr.mxu0 0.0
    %128 = vmatpush1.xpose.msra.mxu0 0.0
    %129 = vmatprep.subr.mxu0 0.0
    %130 = vmatpush1.xpose.msra.mxu0 0.0
    %131 = vmatprep.mubr.f32.mxu0 0.0
    %132 = vmatmul.mubr.f32.gmra.mrb[0].mxu0 %v62
    %v133 = vpop.f32.mrb[0].mxu0
    %v134 = vadd.f32 0.0, %v133
    %v135 = vpop.f32.mrb[0].mxu0
    %136 = vdwg.mxu0
    %v137 = vsel %vm61, %v60, 0
    %v140 = vsel %vm61, %v36, 0
    %142 = vmatprep.subr.mxu0 0.0
    %143 = vmatpush1.xpose.msra.mxu0 %v140
    %144 = vmatprep.subr.mxu0 0.0
    %145 = vmatpush1.xpose.msra.mxu0 0.0
    %146 = vmatprep.subr.mxu0 0.0
    %147 = vmatpush1.xpose.msra.mxu0 0.0
    %148 = vmatprep.subr.mxu0 0.0
    %149 = vmatpush1.xpose.msra.mxu0 0.0
    %150 = vmatprep.subr.mxu0 0.0
    %151 = vmatpush1.xpose.msra.mxu0 0.0
    %152 = vmatprep.subr.mxu0 0.0
    %153 = vmatpush1.xpose.msra.mxu0 0.0
    %154 = vmatprep.subr.mxu0 0.0
    %155 = vmatpush1.xpose.msra.mxu0 0.0
    %156 = vmatprep.subr.mxu0 0.0
    %157 = vmatpush1.xpose.msra.mxu0 0.0
    %158 = vmatprep.subr.mxu0 0.0
    %159 = vmatpush1.xpose.msra.mxu0 0.0
    %160 = vmatprep.subr.mxu0 0.0
    %161 = vmatpush1.xpose.msra.mxu0 0.0
    %162 = vmatprep.subr.mxu0 0.0
    %163 = vmatpush1.xpose.msra.mxu0 0.0
    %164 = vmatprep.subr.mxu0 0.0
    %165 = vmatpush1.xpose.msra.mxu0 0.0
    %166 = vmatprep.subr.mxu0 0.0
    %167 = vmatpush1.xpose.msra.mxu0 0.0
    %168 = vmatprep.subr.mxu0 0.0
    %169 = vmatpush1.xpose.msra.mxu0 0.0
    %170 = vmatprep.subr.mxu0 0.0
    %171 = vmatpush1.xpose.msra.mxu0 0.0
    %172 = vmatprep.subr.mxu0 0.0
    %173 = vmatpush1.xpose.msra.mxu0 0.0
    %174 = vmatprep.subr.mxu0 0.0
    %175 = vmatpush1.xpose.msra.mxu0 0.0
    %176 = vmatprep.subr.mxu0 0.0
    %177 = vmatpush1.xpose.msra.mxu0 0.0
    %178 = vmatprep.subr.mxu0 0.0
    %179 = vmatpush1.xpose.msra.mxu0 0.0
    %180 = vmatprep.subr.mxu0 0.0
    %181 = vmatpush1.xpose.msra.mxu0 0.0
    %182 = vmatprep.subr.mxu0 0.0
    %183 = vmatpush1.xpose.msra.mxu0 0.0
    %184 = vmatprep.subr.mxu0 0.0
    %185 = vmatpush1.xpose.msra.mxu0 0.0
    %186 = vmatprep.subr.mxu0 0.0
    %187 = vmatpush1.xpose.msra.mxu0 0.0
    %188 = vmatprep.subr.mxu0 0.0
    %189 = vmatpush1.xpose.msra.mxu0 0.0
    %190 = vmatprep.subr.mxu0 0.0
    %191 = vmatpush1.xpose.msra.mxu0 0.0
    %192 = vmatprep.subr.mxu0 0.0
    %193 = vmatpush1.xpose.msra.mxu0 0.0
    %194 = vmatprep.subr.mxu0 0.0
    %195 = vmatpush1.xpose.msra.mxu0 0.0
    %196 = vmatprep.subr.mxu0 0.0
    %197 = vmatpush1.xpose.msra.mxu0 0.0
    %198 = vmatprep.subr.mxu0 0.0
    %199 = vmatpush1.xpose.msra.mxu0 0.0
    %200 = vmatprep.subr.mxu0 0.0
    %201 = vmatpush1.xpose.msra.mxu0 0.0
    %202 = vmatprep.subr.mxu0 0.0
    %203 = vmatpush1.xpose.msra.mxu0 0.0
    %204 = vmatprep.subr.mxu0 0.0
    %205 = vmatpush1.xpose.msra.mxu0 0.0
    %206 = vmatprep.mubr.f32.mxu0 0.0
    %207 = vmatmul.mubr.f32.gmra.mrb[0].mxu0 %v137
    %v208 = vpop.f32.mrb[0].mxu0
    %v209 = vadd.f32 0.0, %v208
    %v210 = vpop.f32.mrb[0].mxu0
    %211 = vdwg.mxu0
    %v212 = vld [vmem:[#allocation2] sm:$0x3]
    %v215 = vrot.slane %v209, 7
    %vm216 = vcmask 1041409
    %v217 = vsel %vm216, %v215, %v134
    %vm219 = vcmask 58368
    %v220 = vsel %vm219, %v217, -inf
    %221 = vmax.xlane.f32.xlu0 %v220
    %v222 = vpop.xlane.xlu0 %221
    %v223 = vmax.f32 %v212, %v222
    %v224 = vsub.f32 %v212, %v223
    %v225 = vmul.f32 %v224, 1.442695
    %v226 = vpow.pop %v225
    %228 = vset.pattern.permute.xlu0 0
    %229 = vperm.xlu0 %228, %v223
    %v230 = vpop.permute.xlu0 %229
    %v231 = vrot.slane %v230, 1
    %v234 = vsub.f32 %v134, %v230
    %v235 = vsub.f32 %v209, %v231
    %v236 = vmul.f32 %v234, 1.442695
    %v237 = vpow.pop %v236
    %v238 = vmul.f32 %v235, 1.442695
    %v239 = vpow.pop %v238
    %v240 = vld [vmem:[#allocation3] sm:$0x3]
    %v241 = vmul.f32 %v226, %v240
    %v244 = vrot.slane %v239, 7
    %v245 = vsel %vm216, %v244, %v237
    %v247 = vsel %vm219, %v245, 0.0
    %248 = vadd.xlane.f32.xlu0 %v247
    %v249 = vpop.xlane.xlu0 %248
    %v250 = vadd.f32 %v241, %v249
    %vm251 = vcmask 1024
    %252 = vst.msk [vmem:[#allocation3] sm:$0x3] %vm251, %v250
    %vm253 = vcmask 64512
    %v254 = vsel %vm253, %v237, 0
    %256 = vmatprep.subr.mxu0 0.0
    %257 = vmatpush1.msra.mxu0 %v35
    %258 = vmatprep.subr.mxu0 0.0
    %259 = vmatpush1.msra.mxu0 0.0
    %260 = vmatprep.subr.mxu0 0.0
    %261 = vmatpush1.msra.mxu0 0.0
    %262 = vmatprep.subr.mxu0 0.0
    %263 = vmatpush1.msra.mxu0 0.0
    %264 = vmatprep.subr.mxu0 0.0
    %265 = vmatpush1.msra.mxu0 0.0
    %266 = vmatprep.subr.mxu0 0.0
    %267 = vmatpush1.msra.mxu0 0.0
    %268 = vmatprep.subr.mxu0 0.0
    %269 = vmatpush1.msra.mxu0 0.0
    %270 = vmatprep.subr.mxu0 0.0
    %271 = vmatpush1.msra.mxu0 0.0
    %272 = vmatprep.subr.mxu0 0.0
    %273 = vmatpush1.msra.mxu0 0.0
    %274 = vmatprep.subr.mxu0 0.0
    %275 = vmatpush1.msra.mxu0 0.0
    %276 = vmatprep.subr.mxu0 0.0
    %277 = vmatpush1.msra.mxu0 0.0
    %278 = vmatprep.subr.mxu0 0.0
    %279 = vmatpush1.msra.mxu0 0.0
    %280 = vmatprep.subr.mxu0 0.0
    %281 = vmatpush1.msra.mxu0 0.0
    %282 = vmatprep.subr.mxu0 0.0
    %283 = vmatpush1.msra.mxu0 0.0
    %284 = vmatprep.subr.mxu0 0.0
    %285 = vmatpush1.msra.mxu0 0.0
    %286 = vmatprep.subr.mxu0 0.0
    %287 = vmatpush1.msra.mxu0 0.0
    %288 = vmatprep.subr.mxu0 0.0
    %289 = vmatpush1.msra.mxu0 0.0
    %290 = vmatprep.subr.mxu0 0.0
    %291 = vmatpush1.msra.mxu0 0.0
    %292 = vmatprep.subr.mxu0 0.0
    %293 = vmatpush1.msra.mxu0 0.0
    %294 = vmatprep.subr.mxu0 0.0
    %295 = vmatpush1.msra.mxu0 0.0
    %296 = vmatprep.subr.mxu0 0.0
    %297 = vmatpush1.msra.mxu0 0.0
    %298 = vmatprep.subr.mxu0 0.0
    %299 = vmatpush1.msra.mxu0 0.0
    %300 = vmatprep.subr.mxu0 0.0
    %301 = vmatpush1.msra.mxu0 0.0
    %302 = vmatprep.subr.mxu0 0.0
    %303 = vmatpush1.msra.mxu0 0.0
    %304 = vmatprep.subr.mxu0 0.0
    %305 = vmatpush1.msra.mxu0 0.0
    %306 = vmatprep.subr.mxu0 0.0
    %307 = vmatpush1.msra.mxu0 0.0
    %308 = vmatprep.subr.mxu0 0.0
    %309 = vmatpush1.msra.mxu0 0.0
    %310 = vmatprep.subr.mxu0 0.0
    %311 = vmatpush1.msra.mxu0 0.0
    %312 = vmatprep.subr.mxu0 0.0
    %313 = vmatpush1.msra.mxu0 0.0
    %314 = vmatprep.subr.mxu0 0.0
    %315 = vmatpush1.msra.mxu0 0.0
    %316 = vmatprep.subr.mxu0 0.0
    %317 = vmatpush1.msra.mxu0 0.0
    %318 = vmatprep.subr.mxu0 0.0
    %319 = vmatpush1.msra.mxu0 0.0
    %320 = vmatprep.mubr.f32.mxu0 0.0
    %321 = vmatmul.mubr.f32.gmra.mrb[0].mxu0 %v254
    %v322 = vpop.f32.mrb[0].mxu0
    %v323 = vadd.f32 0.0, %v322
    %v324 = vpop.f32.mrb[0].mxu0
    %325 = vdwg.mxu0
    %v326 = vsel %vm253, %v239, 0
    %328 = vmatprep.subr.mxu0 0.0
    %329 = vmatpush1.msra.mxu0 %v36
    %330 = vmatprep.subr.mxu0 0.0
    %331 = vmatpush1.msra.mxu0 0.0
    %332 = vmatprep.subr.mxu0 0.0
    %333 = vmatpush1.msra.mxu0 0.0
    %334 = vmatprep.subr.mxu0 0.0
    %335 = vmatpush1.msra.mxu0 0.0
    %336 = vmatprep.subr.mxu0 0.0
    %337 = vmatpush1.msra.mxu0 0.0
    %338 = vmatprep.subr.mxu0 0.0
    %339 = vmatpush1.msra.mxu0 0.0
    %340 = vmatprep.subr.mxu0 0.0
    %341 = vmatpush1.msra.mxu0 0.0
    %342 = vmatprep.subr.mxu0 0.0
    %343 = vmatpush1.msra.mxu0 0.0
    %344 = vmatprep.subr.mxu0 0.0
    %345 = vmatpush1.msra.mxu0 0.0
    %346 = vmatprep.subr.mxu0 0.0
    %347 = vmatpush1.msra.mxu0 0.0
    %348 = vmatprep.subr.mxu0 0.0
    %349 = vmatpush1.msra.mxu0 0.0
    %350 = vmatprep.subr.mxu0 0.0
    %351 = vmatpush1.msra.mxu0 0.0
    %352 = vmatprep.subr.mxu0 0.0
    %353 = vmatpush1.msra.mxu0 0.0
    %354 = vmatprep.subr.mxu0 0.0
    %355 = vmatpush1.msra.mxu0 0.0
    %356 = vmatprep.subr.mxu0 0.0
    %357 = vmatpush1.msra.mxu0 0.0
    %358 = vmatprep.subr.mxu0 0.0
    %359 = vmatpush1.msra.mxu0 0.0
    %360 = vmatprep.subr.mxu0 0.0
    %361 = vmatpush1.msra.mxu0 0.0
    %362 = vmatprep.subr.mxu0 0.0
    %363 = vmatpush1.msra.mxu0 0.0
    %364 = vmatprep.subr.mxu0 0.0
    %365 = vmatpush1.msra.mxu0 0.0
    %366 = vmatprep.subr.mxu0 0.0
    %367 = vmatpush1.msra.mxu0 0.0
    %368 = vmatprep.subr.mxu0 0.0
    %369 = vmatpush1.msra.mxu0 0.0
    %370 = vmatprep.subr.mxu0 0.0
    %371 = vmatpush1.msra.mxu0 0.0
    %372 = vmatprep.subr.mxu0 0.0
    %373 = vmatpush1.msra.mxu0 0.0
    %374 = vmatprep.subr.mxu0 0.0
    %375 = vmatpush1.msra.mxu0 0.0
    %376 = vmatprep.subr.mxu0 0.0
    %377 = vmatpush1.msra.mxu0 0.0
    %378 = vmatprep.subr.mxu0 0.0
    %379 = vmatpush1.msra.mxu0 0.0
    %380 = vmatprep.subr.mxu0 0.0
    %381 = vmatpush1.msra.mxu0 0.0
    %382 = vmatprep.subr.mxu0 0.0
    %383 = vmatpush1.msra.mxu0 0.0
    %384 = vmatprep.subr.mxu0 0.0
    %385 = vmatpush1.msra.mxu0 0.0
    %386 = vmatprep.subr.mxu0 0.0
    %387 = vmatpush1.msra.mxu0 0.0
    %388 = vmatprep.subr.mxu0 0.0
    %389 = vmatpush1.msra.mxu0 0.0
    %390 = vmatprep.subr.mxu0 0.0
    %391 = vmatpush1.msra.mxu0 0.0
    %392 = vmatprep.mubr.f32.mxu0 0.0
    %393 = vmatmul.mubr.f32.gmra.mrb[0].mxu0 %v326
    %v394 = vpop.f32.mrb[0].mxu0
    %v395 = vadd.f32 0.0, %v394
    %v396 = vpop.f32.mrb[0].mxu0
    %397 = vdwg.mxu0
    %v398 = vld [vmem:[#allocation4] sm:$0x3]
    %400 = vset.pattern.permute.xlu0 0
    %401 = vperm.xlu0 %400, %v226
    %v402 = vpop.permute.xlu0 %401
    %v404 = vmul.f32 %v402, %v398
    %v407 = vrot.slane %v395, 7
    %v408 = vsel %vm216, %v407, %v323
    %v410 = vadd.f32 %v404, %v408
    %vm411 = vcmask 254976
    %412 = vst.msk [vmem:[#allocation4] sm:$0x3] %vm411, %v410
    %413 = vst.msk [vmem:[#allocation2] sm:$0x3] %vm251, %v223
    // Predicated region
    $region18: #{tpu_custom_call.1} parent=1 // pred_check
      %p414 = pneg %p26
    $region19: #{tpu_custom_call.1} parent=1 // pred_check_branch
      %416 = sbr.rel (%p414) target = $region21
    $region20: #{tpu_custom_call.1} parent=1 // pred_region
      %v417 = vld [vmem:[#allocation4] sm:$0x3]
      %v418 = vld [vmem:[#allocation3] sm:$0x3]
      %420 = vset.pattern.permute.xlu0 0
      %421 = vperm.xlu0 %420, %v418
      %v422 = vpop.permute.xlu0 %421
      %v424 = vrcp.pop %v422
      %v425 = vmul.f32 %v417, %v424
      %426 = vst.msk [vmem:[#allocation8] sm:$0x3] %vm411, %v425
    $region21: #{tpu_custom_call.1} parent=1 // pred_fallthru
      _
    // Predicated region
    $region22: #{tpu_custom_call.1} parent=1 // pred_check
      _
    $region23: #{tpu_custom_call.1} parent=1 // pred_check_branch
      %428 = sbr.rel (0) target = $region25
    $region24: #{tpu_custom_call.1} parent=1 // pred_region
      %s430 = ssub.s32 32, 32
      %431 = vsyncadd [#allocation7], %s430
      %s433 = sshll.u32 [#allocation8], 4
      %s434 = int_to_ptr.vmem [resolvable:$true] %s433
      %436 = dma.vmem_to_hbm [thread:$0]  %s434, 32, %s2, [#allocation7]
    $region25: #{tpu_custom_call.1} parent=1 // pred_fallthru
      _
    // Predicated region
    $region26: #{tpu_custom_call.1} parent=1 // pred_check
      _
    $region27: #{tpu_custom_call.1} parent=1 // pred_check_branch
      %438 = sbr.rel (0) target = $region29
    $region28: #{tpu_custom_call.1} parent=1 // pred_region
      %439 = dma.done [#allocation7], 32
    $region29: #{tpu_custom_call.1} parent=1 // pred_fallthru
      _
    %440 = vsyncpa [#allocation6], 1
    %441 = vsyncpa [#allocation7], 1

</llo_original>
